<compile_context>
chip_gen: v7x
topology: tpu7x:2x2x1
jax: 0.10.0
libtpu: 0.0.40
codegen_flags: <defaults>
</compile_context>

<pallas_src>
import functools

import jax
import jax.numpy as jnp
from jax import lax
from jax.experimental import pallas as pl
from jax.experimental.pallas import tpu as pltpu

_LANE = 128


def _sublane_multiple(dtype):
    """Dtype-aware sublane granularity (packed-vreg row count)."""
    itemsize = jnp.dtype(dtype).itemsize
    if itemsize >= 4:
        return 8
    if itemsize == 2:
        return 16
    return 32


def _vmem_capacity_bytes():
    """Physical VMEM bytes; conservative (v7x, 64 MiB) fallback."""
    try:
        return int(pltpu.get_tpu_info().vmem_capacity_bytes)
    except Exception:
        return 64 * 1024 * 1024


def _argmax_c_kernel(x_ref, o_ref, *, chunk, assume_no_nans):
    # x_ref: (1, C, S, 128)  one batch element, all channels, S*128 pixels
    # o_ref: (1, S, 128)     int32 argmax index over the channel axis
    C = x_ref.shape[1]
    S = x_ref.shape[2]
    nan_aware = jnp.issubdtype(x_ref.dtype, jnp.floating) and not assume_no_nans
    n_chunks = S // chunk

    def body(t, carry):
        r0 = pl.multiple_of(t * chunk, chunk)
        rows = pl.ds(r0, chunk)

        # vreg-resident accumulators for this chunk of rows.
        best_v = x_ref[0, 0, rows, :]
        best_i = jnp.zeros((chunk, _LANE), dtype=jnp.int32)
        if nan_aware:
            best_nan = jnp.isnan(best_v)

        for c in range(1, C):  # static unroll: pure VPU compare/select chain
            v = x_ref[0, c, rows, :]
            gt = v > best_v
            if nan_aware:
                # NaN beats any number; earlier NaN (or earlier equal value)
                # wins -> first-occurrence semantics, same as torch / jnp.
                nan_v = jnp.isnan(v)
                take = jnp.logical_and(jnp.logical_not(best_nan),
                                       jnp.logical_or(nan_v, gt))
                best_nan = jnp.logical_or(best_nan,
                                          jnp.logical_and(take, nan_v))
            else:
                take = gt
            best_v = jnp.where(take, v, best_v)
            best_i = jnp.where(take, jnp.int32(c), best_i)

        o_ref[0, rows, :] = best_i  # single store per chunk
        return carry

    lax.fori_loop(0, n_chunks, body, 0, unroll=min(n_chunks, 8))


def argmax_dim1(x, *, assume_no_nans=False):
    """ArgMax(dim=1) over an NCHW tensor using a Pallas TPU kernel.

    Returns int32 indices of shape (N, H, W).
    """
    N, C, H, W = x.shape
    HW = H * W
    dtype = x.dtype
    itemsize = jnp.dtype(dtype).itemsize
    sub = _sublane_multiple(dtype)

    def round_up(a, b):
        return pl.cdiv(a, b) * b

    # Pad the flattened spatial axis only to a multiple of 128 lanes.
    HWp = round_up(HW, _LANE)
    rows = HWp // _LANE

    # Generation-aware VMEM budgeting.
    vmem_cap = _vmem_capacity_bytes()
    vmem_limit = max(32 << 20, min((vmem_cap * 3) // 4, 96 << 20))   # 48 MiB v7x, 96 MiB v5e/v6e
    buf_budget = max(4 << 20, min((vmem_cap * 3) // 8, 48 << 20))    # 24 MiB v7x, 48 MiB v5e/v6e

    # Rows per grid step: fill most of the double-buffered streaming budget
    # (input: 2*C*128*itemsize per row, output: 2*128*4 per row).
    bytes_per_row = 2 * (C * _LANE * itemsize) + 2 * (_LANE * 4)
    S = (buf_budget // bytes_per_row) // sub * sub
    S = max(sub, min(S, 4096, round_up(rows, sub)))
    # Keep >= 2 total grid steps so both v7x TensorCores get work.
    if N == 1 and rows > sub and pl.cdiv(rows, S) < 2:
        S = max(sub, round_up(pl.cdiv(rows, 2), sub))

    x3 = x.reshape(N, C, HW)
    if HWp != HW:
        x3 = jnp.pad(x3, ((0, 0), (0, 0), (0, HWp - HW)))
    x4 = x3.reshape(N, C, rows, _LANE)

    grid = (N, pl.cdiv(rows, S))  # ragged final row-block handled by Pallas
    kernel = functools.partial(_argmax_c_kernel, chunk=sub,
                               assume_no_nans=assume_no_nans)

    out = pl.pallas_call(
        kernel,
        out_shape=jax.ShapeDtypeStruct((N, rows, _LANE), jnp.int32),
        grid_spec=pltpu.PrefetchScalarGridSpec(
            num_scalar_prefetch=0,
            grid=grid,
            in_specs=[
                pl.BlockSpec((1, C, S, _LANE), lambda n, t: (n, 0, t, 0)),
            ],
            out_specs=pl.BlockSpec((1, S, _LANE), lambda n, t: (n, t, 0)),
        ),
        compiler_params=pltpu.CompilerParams(
            dimension_semantics=("parallel", "parallel"),
            vmem_limit_bytes=int(vmem_limit),
        ),
    )(x4)

    return out.reshape(N, HWp)[:, :HW].reshape(N, H, W)


# TODO(synk): ArgMax(dim=None) (flatten-all argmax to a scalar) is a different
# reduction shape (global cross-lane arg-reduction); only dim=1 is implemented.
# TODO(synk): channel-tiled variant (grid axis over C marked "arbitrary" with
# best_v/best_i in VMEM scratch) for very large class counts.


if __name__ == "__main__":
    key = jax.random.PRNGKey(0)

    # Primary case: small NCHW logits, argmax over channels.
    N, C, H, W = 2, 4, 16, 16
    x = jax.random.normal(key, (N, C, H, W), dtype=jnp.float32)
    y = jax.block_until_ready(argmax_dim1(x))
    ref = jnp.argmax(x, axis=1).astype(jnp.int32)
    assert y.shape == (N, H, W)
    assert bool(jnp.all(y == ref))

    # Ragged spatial size (H*W not a multiple of 128) exercises padding + the
    # ragged final row-block path.
    key2 = jax.random.PRNGKey(1)
    x2 = jax.random.normal(key2, (1, 7, 13, 37), dtype=jnp.float32)
    y2 = jax.block_until_ready(argmax_dim1(x2))
    ref2 = jnp.argmax(x2, axis=1).astype(jnp.int32)
    assert y2.shape == (1, 13, 37)
    assert bool(jnp.all(y2 == ref2))

    # bf16 exercises the dtype-aware sublane granularity (16-row chunks).
    key3 = jax.random.PRNGKey(2)
    x3 = jax.random.normal(key3, (2, 3, 8, 24), dtype=jnp.bfloat16)
    y3 = jax.block_until_ready(argmax_dim1(x3))
    ref3 = jnp.argmax(x3, axis=1).astype(jnp.int32)
    assert y3.shape == (2, 8, 24)
    assert bool(jnp.all(y3 == ref3))

    print("KERNEL_OK")
</pallas_src>

<mosaic_0001>
module attributes {stable_mosaic.version = 11 : i64} {
  func.func @_argmax_c_kernel(%arg0: i32, %arg1: i32, %arg2: memref<1x4x8x128xf32, #tpu.memory_space<vmem>>, %arg3: memref<1x8x128xi32, #tpu.memory_space<vmem>>) attributes {dimension_semantics = [#tpu.dimension_semantics<parallel>, #tpu.dimension_semantics<parallel>], iteration_bounds = array<i64: 2, 1>, scalar_prefetch = 0 : i64, scratch_operands = 0 : i64, tpu.core_type = #tpu.core_type<tc>, window_params = [{transform_indices = @transform_0, window_bounds = array<i64: 1, 4, 8, 128>}, {transform_indices = @transform_1, window_bounds = array<i64: 1, 8, 128>}]} {
    %c0_i32 = arith.constant 0 : i32
    %c8_i32 = arith.constant 8 : i32
    %0 = arith.muli %c0_i32, %c8_i32 : i32
    %1 = tpu.assume_multiple %0, 8 : i32
    %c0 = arith.constant 0 : index
    %c0_0 = arith.constant 0 : index
    %2 = arith.index_cast %1 : i32 to index
    %c0_1 = arith.constant 0 : index
    %3 = vector.load %arg2[%c0, %c0_0, %2, %c0_1] : memref<1x4x8x128xf32, #tpu.memory_space<vmem>>, vector<1x1x8x128xf32>
    %4 = vector.shape_cast %3 : vector<1x1x8x128xf32> to vector<8x128xf32>
    %c0_i32_2 = arith.constant 0 : i32
    %5 = vector.broadcast %c0_i32_2 : i32 to vector<8x128xi32>
    %6 = arith.cmpf one, %4, %4 : vector<8x128xf32>
    %c0_3 = arith.constant 0 : index
    %c1 = arith.constant 1 : index
    %7 = arith.index_cast %1 : i32 to index
    %c0_4 = arith.constant 0 : index
    %8 = vector.load %arg2[%c0_3, %c1, %7, %c0_4] : memref<1x4x8x128xf32, #tpu.memory_space<vmem>>, vector<1x1x8x128xf32>
    %9 = vector.shape_cast %8 : vector<1x1x8x128xf32> to vector<8x128xf32>
    %10 = arith.cmpf ogt, %9, %4 : vector<8x128xf32>
    %11 = arith.cmpf one, %9, %9 : vector<8x128xf32>
    %cst = arith.constant dense<true> : vector<8x128xi1>
    %12 = arith.xori %6, %cst : vector<8x128xi1>
    %13 = arith.ori %11, %10 : vector<8x128xi1>
    %14 = arith.andi %12, %13 : vector<8x128xi1>
    %15 = arith.andi %14, %11 : vector<8x128xi1>
    %16 = arith.ori %6, %15 : vector<8x128xi1>
    %17 = arith.select %14, %9, %4 : vector<8x128xi1>, vector<8x128xf32>
    %c1_i32 = arith.constant 1 : i32
    %18 = vector.broadcast %c1_i32 : i32 to vector<8x128xi32>
    %19 = arith.select %14, %18, %5 : vector<8x128xi1>, vector<8x128xi32>
    %c0_5 = arith.constant 0 : index
    %c2 = arith.constant 2 : index
    %20 = arith.index_cast %1 : i32 to index
    %c0_6 = arith.constant 0 : index
    %21 = vector.load %arg2[%c0_5, %c2, %20, %c0_6] : memref<1x4x8x128xf32, #tpu.memory_space<vmem>>, vector<1x1x8x128xf32>
    %22 = vector.shape_cast %21 : vector<1x1x8x128xf32> to vector<8x128xf32>
    %23 = arith.cmpf ogt, %22, %17 : vector<8x128xf32>
    %24 = arith.cmpf one, %22, %22 : vector<8x128xf32>
    %cst_7 = arith.constant dense<true> : vector<8x128xi1>
    %25 = arith.xori %16, %cst_7 : vector<8x128xi1>
    %26 = arith.ori %24, %23 : vector<8x128xi1>
    %27 = arith.andi %25, %26 : vector<8x128xi1>
    %28 = arith.andi %27, %24 : vector<8x128xi1>
    %29 = arith.ori %16, %28 : vector<8x128xi1>
    %30 = arith.select %27, %22, %17 : vector<8x128xi1>, vector<8x128xf32>
    %c2_i32 = arith.constant 2 : i32
    %31 = vector.broadcast %c2_i32 : i32 to vector<8x128xi32>
    %32 = arith.select %27, %31, %19 : vector<8x128xi1>, vector<8x128xi32>
    %c0_8 = arith.constant 0 : index
    %c3 = arith.constant 3 : index
    %33 = arith.index_cast %1 : i32 to index
    %c0_9 = arith.constant 0 : index
    %34 = vector.load %arg2[%c0_8, %c3, %33, %c0_9] : memref<1x4x8x128xf32, #tpu.memory_space<vmem>>, vector<1x1x8x128xf32>
    %35 = vector.shape_cast %34 : vector<1x1x8x128xf32> to vector<8x128xf32>
    %36 = arith.cmpf ogt, %35, %30 : vector<8x128xf32>
    %37 = arith.cmpf one, %35, %35 : vector<8x128xf32>
    %cst_10 = arith.constant dense<true> : vector<8x128xi1>
    %38 = arith.xori %29, %cst_10 : vector<8x128xi1>
    %39 = arith.ori %37, %36 : vector<8x128xi1>
    %40 = arith.andi %38, %39 : vector<8x128xi1>
    %c3_i32 = arith.constant 3 : i32
    %41 = vector.broadcast %c3_i32 : i32 to vector<8x128xi32>
    %42 = arith.select %40, %41, %32 : vector<8x128xi1>, vector<8x128xi32>
    %c0_11 = arith.constant 0 : index
    %43 = arith.index_cast %1 : i32 to index
    %c0_12 = arith.constant 0 : index
    %44 = vector.load %arg3[%c0_11, %43, %c0_12] : memref<1x8x128xi32, #tpu.memory_space<vmem>>, vector<1x8x128xi32>
    %45 = vector.shape_cast %44 : vector<1x8x128xi32> to vector<8x128xi32>
    %46 = vector.shape_cast %42 : vector<8x128xi32> to vector<1x8x128xi32>
    tpu.vector_store %arg3[%c0_11, %43, %c0_12], %46 {strides = array<i32>} : memref<1x8x128xi32, #tpu.memory_space<vmem>>, vector<1x8x128xi32>,
    %c1_i32_13 = arith.constant 1 : i32
    return
  }
  func.func @transform_0(%arg0: i32, %arg1: i32) -> (i32, i32, i32, i32) {
    %c0_i32 = arith.constant 0 : i32
    %c0_i32_0 = arith.constant 0 : i32
    %c0_i32_1 = arith.constant 0 : i32
    return %arg0, %c0_i32, %arg1, %c0_i32_0 : i32, i32, i32, i32
  }
  func.func @transform_1(%arg0: i32, %arg1: i32) -> (i32, i32, i32) {
    %c0_i32 = arith.constant 0 : i32
    %c0_i32_0 = arith.constant 0 : i32
    return %arg0, %arg1, %c0_i32 : i32, i32, i32
  }
}

</mosaic_0001>

<llo_original>
// kernel: tpu_custom_call.1
$region0: #{tpu_custom_call.1}
  #allocation0 [shape = 'u32[]', space=smem, size = 0x4, offset = 0x4, fixed_abs, tag = 'smem constant byte address 0x4 - core index']
  #allocation1 [shape = 'u32[144,128]{1,0:T(1,128)}', space=vmem, size = 0x12000, scoped, tag = 'internal scratch']
  #allocation6 [shape = 's32[]', space=sflag, size = 0x4, offset = 0, fixed_abs, tag = 'sflag constant byte address 0x0 - dummy sync flag']
  %s0 = inlined_call_operand.hbm [shape: f32[2,4,2,128], index: 0, kind: input, shape index: {}]
  %s1 = inlined_call_operand.hbm [shape: s32[2,2,128], index: 1, kind: output, shape index: {}]
  %s2 = sld [smem:[#allocation0]]
  $region41: #{tpu_custom_call.1} parent=0
    _
  %s4 = ssub.s32 1, %s2
  %s5 = scalar_select 0, %s4, %s2
  $region1: #{tpu_custom_call.1} parent=0
    #allocation2 [shape = 'u8[32768]{0}', space=vmem, size = 0x8000, scoped, tag = 'input window, operand 0']
    #allocation3 [shape = 's32[2]{0}', space=sflag, size = 0x8, scoped, tag = 'scoped memory for tpu_custom_call.1']
    #allocation4 [shape = 's32[2]{0}', space=sflag, size = 0x8, scoped, tag = 'scoped memory for tpu_custom_call.1']
    #allocation5 [shape = 'u8[8192]{0}', space=vmem, size = 0x2000, scoped, tag = 'output window, operand 0']
    %6 = vsyncpa [#allocation3], 0
    %s7 = scalar_lea.sflag [#allocation3], 1
    %8 = vsyncpa %s7, 0
    %9 = vsyncpa [#allocation4], 0
    %s10 = scalar_lea.sflag [#allocation4], 1
    %11 = vsyncpa %s10, 0
    loop: start=0, step=1, limit=4
    $region2: #{tpu_custom_call.1} parent=1 // loop_pre_header
      _
    $region3: #{tpu_custom_call.1} parent=1 // loop_header
      %s13 = sphi 0, %s17
      %p14 = scmp.ge.s32.totalorder %s13, 4
      %s20 = sphi 0, %s32
      %s21 = sphi 0, %s28
      %s22 = sphi 0, %s20
      %s23 = sphi 0, %s21
      %s24 = sphi 0, %s22
      %s25 = sphi 0, %s23
      %s37 = sphi 0, %s39
      %s40 = sphi 0, %s37
      %s41 = sphi 0, %s40
      %s57 = sphi 0, %s41
      %s65 = sphi 0, %s67
      %s68 = sphi 0, %s65
      %s69 = sphi 0, %s68
      %s85 = sphi 0, %s69
    $region4: #{tpu_custom_call.1} parent=1 // loop_header_branch
      %16 = sbr.rel (%p14) target = $region8
    $region5: #{tpu_custom_call.1} parent=1 // loop_body
      %s18 = ssub.s32 %s13, 1
      %s19 = ssub.s32 %s13, 2
      %s26 = sadd.s32 1, %s21
      %p27 = scmp.ge.s32.totalorder %s26, 1
      %s28 = scalar_select %p27, 0, %s26
      %s29 = sadd.s32 1, %s20
      %s30 = scalar_select %p27, %s29, %s20
      %p31 = scmp.ge.s32.totalorder %s30, 2
      %s32 = scalar_select %p31, 0, %s30
      %s33 = ssub.s32 %s20, %s32
      %s34 = ssub.s32 %s21, %s28
      %s35 = sor.u32 %s33, %s34
      %p36 = scmp.eq.s32.totalorder %s35, 0
      %s38 = sadd.s32 %s37, 1
      %s39 = scalar_select %p36, %s37, %s38
      %p42 = pneg %p36
      %p43 = scmp.eq.s32.totalorder %s13, 1
      %p44 = por %p42, %p43
      %p45 = scmp.ne.s32.totalorder %s37, %s40
      %p46 = scmp.eq.s32.totalorder %s13, 0
      %p47 = por %p45, %p46
      %p48 = scmp.ne.s32.totalorder %s37, %s40
      %p49 = scmp.eq.s32.totalorder %s18, 1
      %p50 = por %p48, %p49
      %p51 = scmp.ne.s32.totalorder %s40, %s41
      %p52 = scmp.eq.s32.totalorder %s18, 0
      %p53 = por %p51, %p52
      %p54 = scmp.ne.s32.totalorder %s40, %s41
      %p55 = scmp.eq.s32.totalorder %s19, 1
      %p56 = por %p54, %p55
      %p58 = scmp.ne.s32.totalorder %s41, %s57
      %p59 = scmp.eq.s32.totalorder %s19, 0
      %p60 = por %p58, %p59
      %s61 = ssub.s32 %s20, %s32
      %s62 = ssub.s32 %s21, %s28
      %s63 = sor.u32 %s61, %s62
      %p64 = scmp.eq.s32.totalorder %s63, 0
      %s66 = sadd.s32 %s65, 1
      %s67 = scalar_select %p64, %s65, %s66
      %p70 = pneg %p64
      %p71 = scmp.eq.s32.totalorder %s13, 1
      %p72 = por %p70, %p71
      %p73 = scmp.ne.s32.totalorder %s65, %s68
      %p74 = scmp.eq.s32.totalorder %s13, 0
      %p75 = por %p73, %p74
      %p76 = scmp.ne.s32.totalorder %s65, %s68
      %p77 = scmp.eq.s32.totalorder %s18, 1
      %p78 = por %p76, %p77
      %p79 = scmp.ne.s32.totalorder %s68, %s69
      %p80 = scmp.eq.s32.totalorder %s18, 0
      %p81 = por %p79, %p80
      %p82 = scmp.ne.s32.totalorder %s68, %s69
      %p83 = scmp.eq.s32.totalorder %s19, 1
      %p84 = por %p82, %p83
      %p86 = scmp.ne.s32.totalorder %s69, %s85
      %p87 = scmp.eq.s32.totalorder %s19, 0
      %p88 = por %p86, %p87
      %p89 = scmp.le.s32.totalorder 1, %s13
      %p90 = scmp.lt.s32.totalorder %s13, 3
      %p91 = pnand %p89, %p90
      %p92 = pneg %p91
      // Predicated region
      $region9: #{tpu_custom_call.1} parent=5 // pred_check
        _
      $region10: #{tpu_custom_call.1} parent=5 // pred_check_branch
        %94 = sbr.rel (%p91) target = $region12
      $region11: #{tpu_custom_call.1} parent=5 // pred_region
        %s95 = ssub.s32 %s13, 1
      $region12: #{tpu_custom_call.1} parent=5 // pred_fallthru
        _
      %p96 = scmp.lt.s32.totalorder %s13, 2
      // Predicated region
      $region13: #{tpu_custom_call.1} parent=5 // pred_check
        %p97 = pneg %p96
      $region14: #{tpu_custom_call.1} parent=5 // pred_check_branch
        %99 = sbr.rel (%p97) target = $region16
      $region15: #{tpu_custom_call.1} parent=5 // pred_region
        // Predicated region
        $region17: #{tpu_custom_call.1} parent=15 // pred_check
          %p100 = pneg %p47
        $region18: #{tpu_custom_call.1} parent=15 // pred_check_branch
          %102 = sbr.rel (%p100) target = $region20
        $region19: #{tpu_custom_call.1} parent=15 // pred_region
          #allocation7 [shape = 'u32[6]{0}', space=smem, size = 0x18, scoped, tag = 'DMA stride descriptor']
          %s103 = sand.u32 %s37, 1
          %s104 = scalar_lea.sflag [#allocation3], %s103
          %s105 = sand.u32 %s37, 1
          %s106 = smul.addr %s105, 32
          %s107 = scalar_lea.vmem [#allocation2], %s106
          %s108 = smul.u32 4, %s21
          %s109 = ssub.s32 1, %s108
          %s110 = smul.u32 128, %s109
          %s112 = ssub.s32 512, %s110
          %113 = vsyncadd %s104, %s112
          %p114 = scmp.ne.s32.totalorder 0, %s110
          %s115 = smul.addr %s20, 4
          %s116 = sadd.s32 %s108, %s115
          %s117 = smul.addr %s116, 32
          %s118 = scalar_lea.hbm %s0, %s117
          %s119 = smul.u32 2, %s109
          %s120 = smul.u32 %s119, 4
          %s122 = sshll.u32 1, 14
          %s123 = sxor.u32 4294967295, %s122
          %s125 = sld [smem:[#allocation0]]
          %s126 = sadd.s32 2, %s125
          %s128 = sshll.u32 7, 26
          %s129 = sxor.u32 4294967295, %s128
          %s130 = sand.u32 0, %s129
          %s131 = sshll.u32 %s126, 26
          %s132 = sor.u32 %s130, %s131
          %s133 = sshll.u32 %s107, 4
          %s134 = int_to_ptr.vmem [resolvable:$true] %s133
          %s135 = sshll.u32 %s120, 4
          %140 = sst [smem:[#allocation7]] 32
          %s141 = scalar_lea.smem [#allocation7], 1
          %142 = sst [smem:[%s141]] 128
          %s143 = scalar_lea.smem [#allocation7], 2
          %144 = sst [smem:[%s143]] %s109
          %s145 = scalar_lea.smem [#allocation7], 3
          %146 = sst [smem:[%s145]] 32
          %s147 = scalar_lea.smem [#allocation7], 4
          %148 = sst [smem:[%s147]] 32
          %s149 = scalar_lea.smem [#allocation7], 5
          %150 = sst [smem:[%s149]] 2
          %152 = dma.general (%p114), %s118, %s135, %s134, %s104, [#allocation6], [#allocation7], %s132, 0
        $region20: #{tpu_custom_call.1} parent=15 // pred_fallthru
          _
      $region16: #{tpu_custom_call.1} parent=5 // pred_fallthru
        _
      %p153 = scmp.le.s32.totalorder 1, %s13
      %p154 = scmp.lt.s32.totalorder %s13, 3
      %p155 = pnand %p153, %p154
      %p156 = pneg %p155
      // Predicated region
      $region21: #{tpu_custom_call.1} parent=5 // pred_check
        _
      $region22: #{tpu_custom_call.1} parent=5 // pred_check_branch
        %158 = sbr.rel (%p155) target = $region24
      $region23: #{tpu_custom_call.1} parent=5 // pred_region
        %s159 = ssub.s32 %s13, 1
        %s160 = sand.u32 %s40, 1
        %s161 = scalar_lea.sflag [#allocation3], %s160
        %s162 = sand.u32 %s40, 1
        %s163 = smul.addr %s162, 32
        %s164 = scalar_lea.vmem [#allocation2], %s163
        // Predicated region
        $region25: #{tpu_custom_call.1} parent=23 // pred_check
          %p165 = pneg %p53
        $region26: #{tpu_custom_call.1} parent=23 // pred_check_branch
          %167 = sbr.rel (%p165) target = $region28
        $region27: #{tpu_custom_call.1} parent=23 // pred_region
          %168 = dma.done %s161, 512
        $region28: #{tpu_custom_call.1} parent=23 // pred_fallthru
          _
        %s169 = sand.u32 %s40, 1
        %s170 = scalar_lea.sflag [#allocation3], %s169
        %s171 = sand.u32 %s40, 1
        %s172 = smul.addr %s171, 32
        %s173 = scalar_lea.vmem [#allocation2], %s172
        %p174 = pneg %p53
        %p175 = pneg %p50
        %p176 = pneg %p81
        %p177 = pneg %p78
        %s178 = sand.u32 %s68, 1
        %s179 = scalar_lea.sflag [#allocation4], %s178
        %s180 = sand.u32 %s68, 1
        %s181 = smul.addr %s180, 8
        %s182 = scalar_lea.vmem [#allocation5], %s181
        %s183 = smul.u32 4, %s23
        %s184 = ssub.s32 1, %s183
        %s185 = smul.u32 128, %s184
        %s186 = smul.u32 4, %s23
        %s187 = ssub.s32 1, %s186
        %s188 = smul.u32 32, %s187
        %v189 = vld [vmem:[%s164] sm:$0xff]
        %vm190 = vcmp.ne.f32.partialorder %v189, %v189
        %s191 = sadd.s32 0, 8
        %s192 = scalar_lea.vmem %s164, %s191 [#allocation2]
        %v193 = vld [vmem:[%s192] sm:$0xff]
        %vm194 = vcmp.gt.f32.partialorder %v193, %v189
        %vm195 = vcmp.ne.f32.partialorder %v193, %v193
        %vm196 = vmxor %vm190, 1
        %vm197 = vmor %vm195, %vm194
        %vm198 = vmand %vm196, %vm197
        %vm199 = vmand %vm198, %vm195
        %vm200 = vmor %vm190, %vm199
        %v201 = vsel %vm198, %v193, %v189
        %v202 = vsel %vm198, 1, 0
        %s203 = sadd.s32 0, 16
        %s204 = scalar_lea.vmem %s164, %s203 [#allocation2]
        %v205 = vld [vmem:[%s204] sm:$0xff]
        %vm206 = vcmp.gt.f32.partialorder %v205, %v201
        %vm207 = vcmp.ne.f32.partialorder %v205, %v205
        %vm208 = vmxor %vm200, 1
        %vm209 = vmor %vm207, %vm206
        %vm210 = vmand %vm208, %vm209
        %vm211 = vmand %vm210, %vm207
        %vm212 = vmor %vm200, %vm211
        %v213 = vsel %vm210, %v205, %v201
        %v214 = vsel %vm210, 2, %v202
        %s215 = sadd.s32 0, 24
        %s216 = scalar_lea.vmem %s164, %s215 [#allocation2]
        %v217 = vld [vmem:[%s216] sm:$0xff]
        %vm218 = vcmp.gt.f32.partialorder %v217, %v213
        %vm219 = vcmp.ne.f32.partialorder %v217, %v217
        %vm220 = vmxor %vm212, 1
        %vm221 = vmor %vm219, %vm218
        %vm222 = vmand %vm220, %vm221
        %v223 = vsel %vm222, 3, %v214
        %224 = vst [vmem:[%s182] sm:$0xff] %v223
        %s225 = sand.u32 %s68, 1
        %s226 = scalar_lea.sflag [#allocation4], %s225
        %s227 = sand.u32 %s68, 1
        %s228 = smul.addr %s227, 8
        %s229 = scalar_lea.vmem [#allocation5], %s228
        // Predicated region
        $region29: #{tpu_custom_call.1} parent=23 // pred_check
          %p230 = pneg %p78
        $region30: #{tpu_custom_call.1} parent=23 // pred_check_branch
          %232 = sbr.rel (%p230) target = $region32
        $region31: #{tpu_custom_call.1} parent=23 // pred_region
          %s233 = smul.u32 4, %s23
          %s234 = ssub.s32 1, %s233
          %s235 = smul.u32 32, %s234
          %s237 = ssub.s32 128, %s235
          %238 = vsyncadd %s226, %s237
          %p239 = scmp.ne.s32.totalorder 0, %s235
          %s240 = sadd.s32 %s233, %s22
          %s241 = smul.addr %s240, 32
          %s242 = scalar_lea.hbm %s1, %s241
          %s243 = smul.u32 2, %s234
          %s244 = sshll.u32 %s229, 4
          %s245 = int_to_ptr.vmem [resolvable:$true] %s244
          %s246 = sshll.u32 %s243, 4
          %250 = dma.vmem_to_hbm [thread:$0]  (%p239), %s245, %s246, %s242, %s226, 32, 32, 2
        $region32: #{tpu_custom_call.1} parent=23 // pred_fallthru
          _
      $region24: #{tpu_custom_call.1} parent=5 // pred_fallthru
        _
      %p251 = scmp.le.s32.totalorder 2, %s13
      // Predicated region
      $region33: #{tpu_custom_call.1} parent=5 // pred_check
        %p252 = pneg %p251
      $region34: #{tpu_custom_call.1} parent=5 // pred_check_branch
        %254 = sbr.rel (%p252) target = $region36
      $region35: #{tpu_custom_call.1} parent=5 // pred_region
        %s255 = ssub.s32 %s13, 2
        // Predicated region
        $region37: #{tpu_custom_call.1} parent=35 // pred_check
          %p256 = pneg %p84
        $region38: #{tpu_custom_call.1} parent=35 // pred_check_branch
          %258 = sbr.rel (%p256) target = $region40
        $region39: #{tpu_custom_call.1} parent=35 // pred_region
          %s259 = sand.u32 %s69, 1
          %s260 = scalar_lea.sflag [#allocation4], %s259
          %s261 = sand.u32 %s69, 1
          %s262 = smul.addr %s261, 8
          %s263 = scalar_lea.vmem [#allocation5], %s262
          %264 = dma.done %s260, 128
        $region40: #{tpu_custom_call.1} parent=35 // pred_fallthru
          _
      $region36: #{tpu_custom_call.1} parent=5 // pred_fallthru
        _
    $region6: #{tpu_custom_call.1} parent=1 // loop_footer
      %s17 = sadd.s32 1, %s13
    $region7: #{tpu_custom_call.1} parent=1 // loop_footer_branch
      %12 = sbr.rel target = $region3
    $region8: #{tpu_custom_call.1} parent=1 // loop_exit
      _
    %265 = vsyncpa [#allocation3], 1
    %s266 = scalar_lea.sflag [#allocation3], 1
    %267 = vsyncpa %s266, 1
    %268 = vsyncpa [#allocation4], 1
    %s269 = scalar_lea.sflag [#allocation4], 1
    %270 = vsyncpa %s269, 1

</llo_original>
